<compile_context>
chip_gen: v6e
topology: v6e:2x2x1
jax: 0.10.0
libtpu: 0.0.40
codegen_flags: <defaults>
</compile_context>

<pallas_src>
import jax
import jax.numpy as jnp
from jax.experimental import pallas as pl
from jax.experimental.pallas import tpu as pltpu


def _bbox_head_kernel(x_ref, w_ref, b_ref, o_ref):
    # x_ref: (C_in, thw)   activation tile: channels on sublanes, pixels on lanes
    # w_ref: (C_out, C_in) 1x1-conv weight, resident across the whole grid
    # b_ref: (C_out, 1)    bias, resident; broadcasts along the lane axis
    # o_ref: (C_out, thw)  lane-dense output tile
    acc = jnp.dot(
        w_ref[...],
        x_ref[...],
        preferred_element_type=jnp.float32,
        precision=jax.lax.Precision.HIGHEST,
    )
    o_ref[...] = (acc + b_ref[...].astype(jnp.float32)).astype(o_ref.dtype)


def bbox_head_forward(x_nchw, weight, bias, num_anchors, *, max_spatial_tile=2048):
    """x_nchw: (N, C_in, H, W); weight: (C_out, C_in) from the 1x1 conv; bias: (C_out,)."""
    N, C_in, H, W = x_nchw.shape
    C_out = weight.shape[0]
    assert C_out == num_anchors * 4

    HW = H * W
    # Free view (no transpose, no copy): spatial becomes the lane axis.
    x_flat = x_nchw.reshape(N, C_in, HW)

    # Spatial tile: full extent if it fits (always a legal block since it equals
    # the full dim), otherwise a 128-aligned tile with a masked tail block.
    thw = HW if HW <= max_spatial_tile else max_spatial_tile
    grid = (N, pl.cdiv(HW, thw))

    w = weight                   # (C_out, C_in)
    b = bias.reshape(C_out, 1)   # lane-broadcast inside the kernel

    out_flat = pl.pallas_call(
        _bbox_head_kernel,
        out_shape=jax.ShapeDtypeStruct((N, C_out, HW), x_nchw.dtype),
        grid_spec=pltpu.PrefetchScalarGridSpec(
            num_scalar_prefetch=0,
            grid=grid,
            in_specs=[
                pl.BlockSpec((None, C_in, thw), lambda n, j: (n, 0, j)),
                pl.BlockSpec((C_out, C_in), lambda n, j: (0, 0)),
                pl.BlockSpec((C_out, 1), lambda n, j: (0, 0)),
            ],
            out_specs=pl.BlockSpec((None, C_out, thw), lambda n, j: (n, 0, j)),
        ),
        compiler_params=pltpu.CompilerParams(
            dimension_semantics=("parallel", "parallel")),
    )(x_flat, w, b)

    # Small output finalization: (N, C_out, HW) -> (N, HW, C_out) -> (N, HW*A, 4).
    # This touches only C_out (=4*anchors) values per pixel vs C_in reads, so it
    # is a small fraction of total HBM traffic (unlike transposing x).
    out = jnp.transpose(out_flat, (0, 2, 1))
    return out.reshape(N, HW * num_anchors, 4)


def _reference(x_nchw, weight, bias, num_anchors):
    # pure-JAX reference of the PyTorch BboxHead forward
    N, C_in, H, W = x_nchw.shape
    out = jnp.einsum("nchw,oc->nohw", x_nchw, weight,
                     precision=jax.lax.Precision.HIGHEST)
    out = out + bias[None, :, None, None]
    out = jnp.transpose(out, (0, 2, 3, 1))
    return out.reshape(N, -1, 4)


if __name__ == "__main__":
    # Small shapes consistent with the module (Conv2d(inchannels, num_anchors*4, 1)).
    N, C_in, H, W = 2, 32, 16, 16
    num_anchors = 3
    C_out = num_anchors * 4

    key = jax.random.PRNGKey(0)
    kx, kw, kb = jax.random.split(key, 3)

    x = jax.random.normal(kx, (N, C_in, H, W), dtype=jnp.float32)
    bound = 1.0 / (C_in ** 0.5)
    weight = jax.random.uniform(kw, (C_out, C_in), minval=-bound, maxval=bound,
                                dtype=jnp.float32)
    bias = jax.random.uniform(kb, (C_out,), minval=-bound, maxval=bound,
                              dtype=jnp.float32)

    out = bbox_head_forward(x, weight, bias, num_anchors)
    out = jax.block_until_ready(out)

    ref = _reference(x, weight, bias, num_anchors)
    assert out.shape == (N, H * W * num_anchors, 4), out.shape
    assert jnp.allclose(out, ref, atol=1e-5, rtol=1e-5), "mismatch vs reference"

    print("KERNEL_OK")
</pallas_src>

<mosaic_0001>
module attributes {stable_mosaic.version = 11 : i64} {
  func.func @_bbox_head_kernel(%arg0: i32, %arg1: i32, %arg2: memref<1x32x256xf32, #tpu.memory_space<vmem>>, %arg3: memref<12x32xf32, #tpu.memory_space<vmem>>, %arg4: memref<12x1xf32, #tpu.memory_space<vmem>>, %arg5: memref<1x12x256xf32, #tpu.memory_space<vmem>>) attributes {dimension_semantics = [#tpu.dimension_semantics<parallel>, #tpu.dimension_semantics<parallel>], iteration_bounds = array<i64: 2, 1>, scalar_prefetch = 0 : i64, scratch_operands = 0 : i64, tpu.core_type = #tpu.core_type<tc>, window_params = [{transform_indices = @transform_0, window_bounds = array<i64: 1, 32, 256>}, {pipeline_mode = #tpu.pipeline_mode<synchronous>, transform_indices = @transform_1, window_bounds = array<i64: 12, 32>}, {pipeline_mode = #tpu.pipeline_mode<synchronous>, transform_indices = @transform_2, window_bounds = array<i64: 12, 1>}, {transform_indices = @transform_3, window_bounds = array<i64: 1, 12, 256>}]} {
    %c0 = arith.constant 0 : index
    %c0_0 = arith.constant 0 : index
    %0 = vector.load %arg3[%c0, %c0_0] : memref<12x32xf32, #tpu.memory_space<vmem>>, vector<12x32xf32>
    %c0_1 = arith.constant 0 : index
    %c0_2 = arith.constant 0 : index
    %c0_3 = arith.constant 0 : index
    %1 = vector.load %arg2[%c0_1, %c0_2, %c0_3] : memref<1x32x256xf32, #tpu.memory_space<vmem>>, vector<1x32x256xf32>
    %2 = vector.shape_cast %1 : vector<1x32x256xf32> to vector<32x256xf32>
    %cst = arith.constant dense<0.000000e+00> : vector<12x256xf32>
    %3 = tpu.matmul %0, %2, %cst {dimension_numbers = #tpu.dot_dimension_numbers<[1], [0], [0], [1], [0, 0, 1, 1], [], []>, precision = #tpu.contract_precision<fp32>} : vector<12x32xf32>, vector<32x256xf32>, vector<12x256xf32> -> vector<12x256xf32>
    %c0_4 = arith.constant 0 : index
    %c0_5 = arith.constant 0 : index
    %4 = vector.load %arg4[%c0_4, %c0_5] : memref<12x1xf32, #tpu.memory_space<vmem>>, vector<12x1xf32>
    %5 = vector.broadcast %4 : vector<12x1xf32> to vector<12x256xf32>
    %6 = arith.addf %3, %5 : vector<12x256xf32>
    %c0_6 = arith.constant 0 : index
    %c0_7 = arith.constant 0 : index
    %c0_8 = arith.constant 0 : index
    %7 = vector.load %arg5[%c0_6, %c0_7, %c0_8] : memref<1x12x256xf32, #tpu.memory_space<vmem>>, vector<1x12x256xf32>
    %8 = vector.shape_cast %7 : vector<1x12x256xf32> to vector<12x256xf32>
    %9 = vector.shape_cast %6 : vector<12x256xf32> to vector<1x12x256xf32>
    tpu.vector_store %arg5[%c0_6, %c0_7, %c0_8], %9 {strides = array<i32>} : memref<1x12x256xf32, #tpu.memory_space<vmem>>, vector<1x12x256xf32>,
    return
  }
  func.func @transform_0(%arg0: i32, %arg1: i32) -> (i32, i32, i32) {
    %c0_i32 = arith.constant 0 : i32
    %c0_i32_0 = arith.constant 0 : i32
    return %arg0, %c0_i32, %arg1 : i32, i32, i32
  }
  func.func @transform_1(%arg0: i32, %arg1: i32) -> (i32, i32) {
    %c0_i32 = arith.constant 0 : i32
    %c0_i32_0 = arith.constant 0 : i32
    %c0_i32_1 = arith.constant 0 : i32
    return %c0_i32, %c0_i32_0 : i32, i32
  }
  func.func @transform_2(%arg0: i32, %arg1: i32) -> (i32, i32) {
    %c0_i32 = arith.constant 0 : i32
    %c0_i32_0 = arith.constant 0 : i32
    %c0_i32_1 = arith.constant 0 : i32
    return %c0_i32, %c0_i32_0 : i32, i32
  }
  func.func @transform_3(%arg0: i32, %arg1: i32) -> (i32, i32, i32) {
    %c0_i32 = arith.constant 0 : i32
    %c0_i32_0 = arith.constant 0 : i32
    return %arg0, %c0_i32, %arg1 : i32, i32, i32
  }
}

</mosaic_0001>

<llo_original>
// kernel: tpu_custom_call.1
$region0: #{tpu_custom_call.1}
  #allocation0 [shape = 'u32[]', space=smem, size = 0x4, offset = 0x4, fixed_abs, tag = 'smem constant byte address 0x4 - core index']
  #allocation1 [shape = 'u32[144,128]{1,0:T(1,128)}', space=vmem, size = 0x12000, scoped, tag = 'internal scratch']
  %s0 = inlined_call_operand.hbm [shape: f32[2,32,256], index: 0, kind: input, shape index: {}]
  %s1 = inlined_call_operand.vmem [shape: f32[12,32], index: 1, kind: input, shape index: {}]
  %s2 = inlined_call_operand.vmem [shape: f32[12,1], index: 2, kind: input, shape index: {}]
  %s3 = inlined_call_operand.vmem [shape: f32[2,12,256], index: 3, kind: output, shape index: {}]
  %s4 = sld [smem:[#allocation0]]
  $region49: #{tpu_custom_call.1} parent=0
    _
  %s6 = ssub.s32 1, %s4
  %s7 = scalar_select 0, %s6, %s4
  $region1: #{tpu_custom_call.1} parent=0
    #allocation2 [shape = 'u8[65536]{0}', space=vmem, size = 0x10000, scoped, tag = 'input window, operand 0']
    #allocation3 [shape = 's32[2]{0}', space=sflag, size = 0x8, scoped, tag = 'scoped memory for tpu_custom_call.1']
    %8 = vsyncpa [#allocation3], 0
    %s9 = scalar_lea.sflag [#allocation3], 1
    %10 = vsyncpa %s9, 0
    loop: start=0, step=1, limit=4
    $region2: #{tpu_custom_call.1} parent=1 // loop_pre_header
      _
    $region3: #{tpu_custom_call.1} parent=1 // loop_header
      %s12 = sphi 0, %s16
      %p13 = scmp.ge.s32.totalorder %s12, 4
      %s19 = sphi 0, %s31
      %s20 = sphi 0, %s27
      %s21 = sphi 0, %s19
      %s22 = sphi 0, %s20
      %s23 = sphi 0, %s21
      %s24 = sphi 0, %s22
      %s36 = sphi 0, %s38
      %s39 = sphi 0, %s36
      %s40 = sphi 0, %s39
      %s56 = sphi 0, %s40
      %s60 = sphi 0, %s60
      %s62 = sphi 0, %s60
      %s63 = sphi 0, %s62
      %s77 = sphi 0, %s63
      %s81 = sphi 0, %s81
      %s83 = sphi 0, %s81
      %s84 = sphi 0, %s83
      %s98 = sphi 0, %s84
      %s106 = sphi 0, %s108
      %s109 = sphi 0, %s106
      %s110 = sphi 0, %s109
      %s126 = sphi 0, %s110
    $region4: #{tpu_custom_call.1} parent=1 // loop_header_branch
      %15 = sbr.rel (%p13) target = $region8
    $region5: #{tpu_custom_call.1} parent=1 // loop_body
      %s17 = ssub.s32 %s12, 1
      %s18 = ssub.s32 %s12, 2
      %s25 = sadd.s32 1, %s20
      %p26 = scmp.ge.s32.totalorder %s25, 1
      %s27 = scalar_select %p26, 0, %s25
      %s28 = sadd.s32 1, %s19
      %s29 = scalar_select %p26, %s28, %s19
      %p30 = scmp.ge.s32.totalorder %s29, 2
      %s31 = scalar_select %p30, 0, %s29
      %s32 = ssub.s32 %s19, %s31
      %s33 = ssub.s32 %s20, %s27
      %s34 = sor.u32 %s32, %s33
      %p35 = scmp.eq.s32.totalorder %s34, 0
      %s37 = sadd.s32 %s36, 1
      %s38 = scalar_select %p35, %s36, %s37
      %p41 = pneg %p35
      %p42 = scmp.eq.s32.totalorder %s12, 1
      %p43 = por %p41, %p42
      %p44 = scmp.ne.s32.totalorder %s36, %s39
      %p45 = scmp.eq.s32.totalorder %s12, 0
      %p46 = por %p44, %p45
      %p47 = scmp.ne.s32.totalorder %s36, %s39
      %p48 = scmp.eq.s32.totalorder %s17, 1
      %p49 = por %p47, %p48
      %p50 = scmp.ne.s32.totalorder %s39, %s40
      %p51 = scmp.eq.s32.totalorder %s17, 0
      %p52 = por %p50, %p51
      %p53 = scmp.ne.s32.totalorder %s39, %s40
      %p54 = scmp.eq.s32.totalorder %s18, 1
      %p55 = por %p53, %p54
      %p57 = scmp.ne.s32.totalorder %s40, %s56
      %p58 = scmp.eq.s32.totalorder %s18, 0
      %p59 = por %p57, %p58
      %s61 = sadd.s32 %s60, 1
      %p64 = scmp.eq.s32.totalorder %s12, 1
      %p65 = scmp.ne.s32.totalorder %s60, %s62
      %p66 = scmp.eq.s32.totalorder %s12, 0
      %p67 = por %p65, %p66
      %p68 = scmp.ne.s32.totalorder %s60, %s62
      %p69 = scmp.eq.s32.totalorder %s17, 1
      %p70 = por %p68, %p69
      %p71 = scmp.ne.s32.totalorder %s62, %s63
      %p72 = scmp.eq.s32.totalorder %s17, 0
      %p73 = por %p71, %p72
      %p74 = scmp.ne.s32.totalorder %s62, %s63
      %p75 = scmp.eq.s32.totalorder %s18, 1
      %p76 = por %p74, %p75
      %p78 = scmp.ne.s32.totalorder %s63, %s77
      %p79 = scmp.eq.s32.totalorder %s18, 0
      %p80 = por %p78, %p79
      %s82 = sadd.s32 %s81, 1
      %p85 = scmp.eq.s32.totalorder %s12, 1
      %p86 = scmp.ne.s32.totalorder %s81, %s83
      %p87 = scmp.eq.s32.totalorder %s12, 0
      %p88 = por %p86, %p87
      %p89 = scmp.ne.s32.totalorder %s81, %s83
      %p90 = scmp.eq.s32.totalorder %s17, 1
      %p91 = por %p89, %p90
      %p92 = scmp.ne.s32.totalorder %s83, %s84
      %p93 = scmp.eq.s32.totalorder %s17, 0
      %p94 = por %p92, %p93
      %p95 = scmp.ne.s32.totalorder %s83, %s84
      %p96 = scmp.eq.s32.totalorder %s18, 1
      %p97 = por %p95, %p96
      %p99 = scmp.ne.s32.totalorder %s84, %s98
      %p100 = scmp.eq.s32.totalorder %s18, 0
      %p101 = por %p99, %p100
      %s102 = ssub.s32 %s19, %s31
      %s103 = ssub.s32 %s20, %s27
      %s104 = sor.u32 %s102, %s103
      %p105 = scmp.eq.s32.totalorder %s104, 0
      %s107 = sadd.s32 %s106, 1
      %s108 = scalar_select %p105, %s106, %s107
      %p111 = pneg %p105
      %p112 = scmp.eq.s32.totalorder %s12, 1
      %p113 = por %p111, %p112
      %p114 = scmp.ne.s32.totalorder %s106, %s109
      %p115 = scmp.eq.s32.totalorder %s12, 0
      %p116 = por %p114, %p115
      %p117 = scmp.ne.s32.totalorder %s106, %s109
      %p118 = scmp.eq.s32.totalorder %s17, 1
      %p119 = por %p117, %p118
      %p120 = scmp.ne.s32.totalorder %s109, %s110
      %p121 = scmp.eq.s32.totalorder %s17, 0
      %p122 = por %p120, %p121
      %p123 = scmp.ne.s32.totalorder %s109, %s110
      %p124 = scmp.eq.s32.totalorder %s18, 1
      %p125 = por %p123, %p124
      %p127 = scmp.ne.s32.totalorder %s110, %s126
      %p128 = scmp.eq.s32.totalorder %s18, 0
      %p129 = por %p127, %p128
      %p130 = scmp.le.s32.totalorder 1, %s12
      %p131 = scmp.lt.s32.totalorder %s12, 3
      %p132 = pnand %p130, %p131
      %p133 = pneg %p132
      // Predicated region
      $region9: #{tpu_custom_call.1} parent=5 // pred_check
        _
      $region10: #{tpu_custom_call.1} parent=5 // pred_check_branch
        %135 = sbr.rel (%p132) target = $region12
      $region11: #{tpu_custom_call.1} parent=5 // pred_region
        %s136 = ssub.s32 %s12, 1
        // Predicated region
        $region13: #{tpu_custom_call.1} parent=11 // pred_check
          %p137 = pneg %p73
        $region14: #{tpu_custom_call.1} parent=11 // pred_check_branch
          %139 = sbr.rel (%p137) target = $region16
        $region15: #{tpu_custom_call.1} parent=11 // pred_region
          _
        $region16: #{tpu_custom_call.1} parent=11 // pred_fallthru
          _
        // Predicated region
        $region17: #{tpu_custom_call.1} parent=11 // pred_check
          %p140 = pneg %p94
        $region18: #{tpu_custom_call.1} parent=11 // pred_check_branch
          %142 = sbr.rel (%p140) target = $region20
        $region19: #{tpu_custom_call.1} parent=11 // pred_region
          _
        $region20: #{tpu_custom_call.1} parent=11 // pred_fallthru
          _
      $region12: #{tpu_custom_call.1} parent=5 // pred_fallthru
        _
      %p143 = scmp.lt.s32.totalorder %s12, 2
      // Predicated region
      $region21: #{tpu_custom_call.1} parent=5 // pred_check
        %p144 = pneg %p143
      $region22: #{tpu_custom_call.1} parent=5 // pred_check_branch
        %146 = sbr.rel (%p144) target = $region24
      $region23: #{tpu_custom_call.1} parent=5 // pred_region
        // Predicated region
        $region25: #{tpu_custom_call.1} parent=23 // pred_check
          %p147 = pneg %p46
        $region26: #{tpu_custom_call.1} parent=23 // pred_check_branch
          %149 = sbr.rel (%p147) target = $region28
        $region27: #{tpu_custom_call.1} parent=23 // pred_region
          %s150 = sand.u32 %s36, 1
          %s151 = scalar_lea.sflag [#allocation3], %s150
          %s152 = sand.u32 %s36, 1
          %s153 = smul.addr %s152, 64
          %s154 = scalar_lea.vmem [#allocation2], %s153
          %s155 = smul.u32 2, %s20
          %s157 = ssub.s32 1024, 1024
          %158 = vsyncadd %s151, %s157
          %s159 = smul.addr %s19, 8
          %s160 = sadd.s32 %s155, %s159
          %s161 = smul.addr %s160, 128
          %s162 = scalar_lea.hbm %s0, %s161
          %s163 = sshll.u32 %s154, 4
          %s164 = int_to_ptr.vmem [resolvable:$true] %s163
          %169 = dma.hbm_to_vmem [thread:$0]  %s162, 1024, %s164, %s151, 256, 256, 16
        $region28: #{tpu_custom_call.1} parent=23 // pred_fallthru
          _
      $region24: #{tpu_custom_call.1} parent=5 // pred_fallthru
        _
      %p170 = scmp.le.s32.totalorder 1, %s12
      %p171 = scmp.lt.s32.totalorder %s12, 3
      %p172 = pnand %p170, %p171
      %p173 = pneg %p172
      // Predicated region
      $region29: #{tpu_custom_call.1} parent=5 // pred_check
        _
      $region30: #{tpu_custom_call.1} parent=5 // pred_check_branch
        %175 = sbr.rel (%p172) target = $region32
      $region31: #{tpu_custom_call.1} parent=5 // pred_region
        %s176 = ssub.s32 %s12, 1
        %s177 = sand.u32 %s39, 1
        %s178 = scalar_lea.sflag [#allocation3], %s177
        %s179 = sand.u32 %s39, 1
        %s180 = smul.addr %s179, 64
        %s181 = scalar_lea.vmem [#allocation2], %s180
        // Predicated region
        $region33: #{tpu_custom_call.1} parent=31 // pred_check
          %p182 = pneg %p52
        $region34: #{tpu_custom_call.1} parent=31 // pred_check_branch
          %184 = sbr.rel (%p182) target = $region36
        $region35: #{tpu_custom_call.1} parent=31 // pred_region
          %185 = dma.done %s178, 1024
        $region36: #{tpu_custom_call.1} parent=31 // pred_fallthru
          _
        %s186 = sand.u32 %s39, 1
        %s187 = scalar_lea.sflag [#allocation3], %s186
        %s188 = sand.u32 %s39, 1
        %s189 = smul.addr %s188, 64
        %s190 = scalar_lea.vmem [#allocation2], %s189
        %p191 = pneg %p52
        %p192 = pneg %p49
        %p193 = pneg %p73
        %p194 = pneg %p70
        %p195 = pneg %p94
        %p196 = pneg %p91
        %p197 = pneg %p122
        %p198 = pneg %p119
        %s199 = smul.u32 2, %s22
        %p200 = scmp.lt.s32.totalorder %s21, 1
        %s201 = scalar_select %p200, %s21, 1
        %p202 = scmp.lt.s32.totalorder %s199, 1
        %s203 = scalar_select %p202, %s199, 1
        %s204 = smul.addr %s201, 4
        %s205 = sadd.s32 %s203, %s204
        %s206 = smul.addr %s205, 8
        %s207 = scalar_lea.vmem %s3, %s206
        %s208 = smul.u32 2, %s22
        %s209 = smul.u32 2, %s22
        %p210 = scmp.lt.s32.totalorder %s21, 1
        %s211 = scalar_select %p210, %s21, 1
        %p212 = scmp.lt.s32.totalorder %s209, 1
        %s213 = scalar_select %p212, %s209, 1
        %s214 = smul.addr %s211, 4
        %s215 = sadd.s32 %s213, %s214
        %s216 = smul.addr %s215, 8
        %s217 = scalar_lea.vmem %s3, %s216
        %s218 = smul.u32 2, %s22
        %v219 = vld [vmem:[%s1] sm:$0xff]
        %v220 = vld [vmem:[%s1 + $0x8] sm:$0xf]
        %v221 = vld [vmem:[%s181] sm:$0xff]
        %v222 = vld [vmem:[%s181 + $0x8] sm:$0xff]
        %v223 = vld [vmem:[%s181 + $0x10] sm:$0xff]
        %v224 = vld [vmem:[%s181 + $0x18] sm:$0xff]
        %v225 = vld [vmem:[%s181 + $0x20] sm:$0xff]
        %v226 = vld [vmem:[%s181 + $0x28] sm:$0xff]
        %v227 = vld [vmem:[%s181 + $0x30] sm:$0xff]
        %v228 = vld [vmem:[%s181 + $0x38] sm:$0xff]
        %v229 = vld [vmem:[%s2] sm:$0xff]
        %v230 = vld [vmem:[%s2 + $0x8] sm:$0xf]
        %232 = vset.pattern.permute.xlu0 0
        %233 = vperm.xlu0 %232, %v229
        %v234 = vpop.permute.xlu0 %233
        %237 = vset.pattern.permute.xlu0 0
        %238 = vperm.xlu0 %237, %v230
        %v239 = vpop.permute.xlu0 %238
        %vm241 = vcmask 261120
        %v243 = vsel %vm241, %v219, 0
        %v246 = vsel %vm241, %v220, 0
        %248 = vmatprep.subr.mxu0 0.0
        %249 = vmatpush1.msra.mxu0 0.0
        %250 = vmatprep.subr.mxu0 0.0
        %251 = vmatpush1.msra.mxu0 0.0
        %252 = vmatprep.subr.mxu0 0.0
        %253 = vmatpush1.msra.mxu0 0.0
        %254 = vmatprep.subr.mxu0 0.0
        %255 = vmatpush1.msra.mxu0 0.0
        %256 = vmatprep.subr.mxu0 0.0
        %257 = vmatpush1.msra.mxu0 0.0
        %258 = vmatprep.subr.mxu0 0.0
        %259 = vmatpush1.msra.mxu0 0.0
        %260 = vmatprep.subr.mxu0 0.0
        %261 = vmatpush1.msra.mxu0 0.0
        %262 = vmatprep.subr.mxu0 0.0
        %263 = vmatpush1.msra.mxu0 0.0
        %264 = vmatprep.subr.mxu0 0.0
        %265 = vmatpush1.msra.mxu0 0.0
        %266 = vmatprep.subr.mxu0 0.0
        %267 = vmatpush1.msra.mxu0 0.0
        %268 = vmatprep.subr.mxu0 0.0
        %269 = vmatpush1.msra.mxu0 0.0
        %270 = vmatprep.subr.mxu0 0.0
        %271 = vmatpush1.msra.mxu0 0.0
        %v272 = vand.u32 %v228, 4294901760
        %273 = vmatprep.subr.mxu0 %v272
        %v274 = vand.u32 %v227, 4294901760
        %275 = vmatpush1.msra.mxu0 %v274
        %v276 = vand.u32 %v226, 4294901760
        %277 = vmatprep.subr.mxu0 %v276
        %v278 = vand.u32 %v225, 4294901760
        %279 = vmatpush1.msra.mxu0 %v278
        %v280 = vand.u32 %v224, 4294901760
        %281 = vmatprep.subr.mxu0 %v280
        %v282 = vand.u32 %v223, 4294901760
        %283 = vmatpush1.msra.mxu0 %v282
        %v284 = vand.u32 %v222, 4294901760
        %285 = vmatprep.subr.mxu0 %v284
        %v286 = vand.u32 %v221, 4294901760
        %287 = vmatpush1.msra.mxu0 %v286
        %288 = vmatprep.subr.mxu0 0.0
        %289 = vmatpush2.msra.mxu0 0.0
        %290 = vmatprep.subr.mxu0 0.0
        %291 = vmatpush2.msra.mxu0 0.0
        %292 = vmatprep.subr.mxu0 0.0
        %293 = vmatpush2.msra.mxu0 0.0
        %294 = vmatprep.subr.mxu0 0.0
        %295 = vmatpush2.msra.mxu0 0.0
        %296 = vmatprep.subr.mxu0 0.0
        %297 = vmatpush2.msra.mxu0 0.0
        %298 = vmatprep.subr.mxu0 0.0
        %299 = vmatpush2.msra.mxu0 0.0
        %300 = vmatprep.subr.mxu0 0.0
        %301 = vmatpush2.msra.mxu0 0.0
        %302 = vmatprep.subr.mxu0 0.0
        %303 = vmatpush2.msra.mxu0 0.0
        %304 = vmatprep.subr.mxu0 0.0
        %305 = vmatpush2.msra.mxu0 0.0
        %306 = vmatprep.subr.mxu0 0.0
        %307 = vmatpush2.msra.mxu0 0.0
        %308 = vmatprep.subr.mxu0 0.0
        %309 = vmatpush2.msra.mxu0 0.0
        %310 = vmatprep.subr.mxu0 0.0
        %311 = vmatpush2.msra.mxu0 0.0
        %312 = vmatprep.subr.mxu0 0.0
        %313 = vmatpush2.msra.mxu0 0.0
        %314 = vmatprep.subr.mxu0 0.0
        %315 = vmatpush2.msra.mxu0 0.0
        %316 = vmatprep.subr.mxu0 0.0
        %317 = vmatpush2.msra.mxu0 0.0
        %318 = vmatprep.subr.mxu0 0.0
        %319 = vmatpush2.msra.mxu0 0.0
        %320 = vmatprep.mubr.f32.mxu0 0.0
        %v321 = vand.u32 %v243, 4294901760
        %v322 = vsub.f32 %v243, %v321
        %v323 = vand.u32 %v322, 4294901760
        %v324 = vsub.f32 %v322, %v323
        %v325 = vand.u32 %v324, 4294901760
        %326 = vmatmul.mubr.f32.gmra.mxu0 %v325
        %v327 = vpop.f32.mrf.mxu0
        %v328 = vadd.f32 %v234, %v327
        %v329 = vpop.f32.mrf.mxu0
        %v330 = vadd.f32 %v234, %v329
        %331 = vmatprep.mubr.f32.mxu0 0.0
        %v332 = vand.u32 %v246, 4294901760
        %v333 = vsub.f32 %v246, %v332
        %v334 = vand.u32 %v333, 4294901760
        %v335 = vsub.f32 %v333, %v334
        %v336 = vand.u32 %v335, 4294901760
        %337 = vmatmul.mubr.f32.gmra.mxu0 %v336
        %v338 = vpop.f32.mrf.mxu0
        %v339 = vadd.f32 %v239, %v338
        %v340 = vpop.f32.mrf.mxu0
        %v341 = vadd.f32 %v239, %v340
        %342 = vdwg.mxu0
        %343 = vmatprep.subr.mxu0 0.0
        %344 = vmatpush1.msra.mxu0 0.0
        %345 = vmatprep.subr.mxu0 0.0
        %346 = vmatpush1.msra.mxu0 0.0
        %347 = vmatprep.subr.mxu0 0.0
        %348 = vmatpush1.msra.mxu0 0.0
        %349 = vmatprep.subr.mxu0 0.0
        %350 = vmatpush1.msra.mxu0 0.0
        %351 = vmatprep.subr.mxu0 0.0
        %352 = vmatpush1.msra.mxu0 0.0
        %353 = vmatprep.subr.mxu0 0.0
        %354 = vmatpush1.msra.mxu0 0.0
        %355 = vmatprep.subr.mxu0 0.0
        %356 = vmatpush1.msra.mxu0 0.0
        %357 = vmatprep.subr.mxu0 0.0
        %358 = vmatpush1.msra.mxu0 0.0
        %359 = vmatprep.subr.mxu0 0.0
        %360 = vmatpush1.msra.mxu0 0.0
        %361 = vmatprep.subr.mxu0 0.0
        %362 = vmatpush1.msra.mxu0 0.0
        %363 = vmatprep.subr.mxu0 0.0
        %364 = vmatpush1.msra.mxu0 0.0
        %365 = vmatprep.subr.mxu0 0.0
        %366 = vmatpush1.msra.mxu0 0.0
        %v367 = vand.u32 %v228, 4294901760
        %v368 = vsub.f32 %v228, %v367
        %v369 = vand.u32 %v368, 4294901760
        %v370 = vsub.f32 %v368, %v369
        %v371 = vand.u32 %v370, 4294901760
        %372 = vmatprep.subr.mxu0 %v371
        %v373 = vand.u32 %v227, 4294901760
        %v374 = vsub.f32 %v227, %v373
        %v375 = vand.u32 %v374, 4294901760
        %v376 = vsub.f32 %v374, %v375
        %v377 = vand.u32 %v376, 4294901760
        %378 = vmatpush1.msra.mxu0 %v377
        %v379 = vand.u32 %v226, 4294901760
        %v380 = vsub.f32 %v226, %v379
        %v381 = vand.u32 %v380, 4294901760
        %v382 = vsub.f32 %v380, %v381
        %v383 = vand.u32 %v382, 4294901760
        %384 = vmatprep.subr.mxu0 %v383
        %v385 = vand.u32 %v225, 4294901760
        %v386 = vsub.f32 %v225, %v385
        %v387 = vand.u32 %v386, 4294901760
        %v388 = vsub.f32 %v386, %v387
        %v389 = vand.u32 %v388, 4294901760
        %390 = vmatpush1.msra.mxu0 %v389
        %v391 = vand.u32 %v224, 4294901760
        %v392 = vsub.f32 %v224, %v391
        %v393 = vand.u32 %v392, 4294901760
        %v394 = vsub.f32 %v392, %v393
        %v395 = vand.u32 %v394, 4294901760
        %396 = vmatprep.subr.mxu0 %v395
        %v397 = vand.u32 %v223, 4294901760
        %v398 = vsub.f32 %v223, %v397
        %v399 = vand.u32 %v398, 4294901760
        %v400 = vsub.f32 %v398, %v399
        %v401 = vand.u32 %v400, 4294901760
        %402 = vmatpush1.msra.mxu0 %v401
        %v403 = vand.u32 %v222, 4294901760
        %v404 = vsub.f32 %v222, %v403
        %v405 = vand.u32 %v404, 4294901760
        %v406 = vsub.f32 %v404, %v405
        %v407 = vand.u32 %v406, 4294901760
        %408 = vmatprep.subr.mxu0 %v407
        %v409 = vand.u32 %v221, 4294901760
        %v410 = vsub.f32 %v221, %v409
        %v411 = vand.u32 %v410, 4294901760
        %v412 = vsub.f32 %v410, %v411
        %v413 = vand.u32 %v412, 4294901760
        %414 = vmatpush1.msra.mxu0 %v413
        %415 = vmatprep.subr.mxu0 0.0
        %416 = vmatpush2.msra.mxu0 0.0
        %417 = vmatprep.subr.mxu0 0.0
        %418 = vmatpush2.msra.mxu0 0.0
        %419 = vmatprep.subr.mxu0 0.0
        %420 = vmatpush2.msra.mxu0 0.0
        %421 = vmatprep.subr.mxu0 0.0
        %422 = vmatpush2.msra.mxu0 0.0
        %423 = vmatprep.subr.mxu0 0.0
        %424 = vmatpush2.msra.mxu0 0.0
        %425 = vmatprep.subr.mxu0 0.0
        %426 = vmatpush2.msra.mxu0 0.0
        %427 = vmatprep.subr.mxu0 0.0
        %428 = vmatpush2.msra.mxu0 0.0
        %429 = vmatprep.subr.mxu0 0.0
        %430 = vmatpush2.msra.mxu0 0.0
        %431 = vmatprep.subr.mxu0 0.0
        %432 = vmatpush2.msra.mxu0 0.0
        %433 = vmatprep.subr.mxu0 0.0
        %434 = vmatpush2.msra.mxu0 0.0
        %435 = vmatprep.subr.mxu0 0.0
        %436 = vmatpush2.msra.mxu0 0.0
        %437 = vmatprep.subr.mxu0 0.0
        %438 = vmatpush2.msra.mxu0 0.0
        %439 = vmatprep.subr.mxu0 0.0
        %440 = vmatpush2.msra.mxu0 0.0
        %441 = vmatprep.subr.mxu0 0.0
        %442 = vmatpush2.msra.mxu0 0.0
        %443 = vmatprep.subr.mxu0 0.0
        %444 = vmatpush2.msra.mxu0 0.0
        %445 = vmatprep.subr.mxu0 0.0
        %446 = vmatpush2.msra.mxu0 0.0
        %447 = vmatprep.mubr.f32.mxu0 0.0
        %v448 = vand.u32 %v243, 4294901760
        %449 = vmatmul.mubr.f32.gmra.mxu0 %v448
        %v450 = vpop.f32.mrf.mxu0
        %v451 = vadd.f32 %v328, %v450
        %v452 = vpop.f32.mrf.mxu0
        %v453 = vadd.f32 %v330, %v452
        %454 = vmatprep.mubr.f32.mxu0 0.0
        %v455 = vand.u32 %v246, 4294901760
        %456 = vmatmul.mubr.f32.gmra.mxu0 %v455
        %v457 = vpop.f32.mrf.mxu0
        %v458 = vadd.f32 %v339, %v457
        %v459 = vpop.f32.mrf.mxu0
        %v460 = vadd.f32 %v341, %v459
        %461 = vdwg.mxu0
        %462 = vmatprep.subr.mxu0 0.0
        %463 = vmatpush1.msra.mxu0 0.0
        %464 = vmatprep.subr.mxu0 0.0
        %465 = vmatpush1.msra.mxu0 0.0
        %466 = vmatprep.subr.mxu0 0.0
        %467 = vmatpush1.msra.mxu0 0.0
        %468 = vmatprep.subr.mxu0 0.0
        %469 = vmatpush1.msra.mxu0 0.0
        %470 = vmatprep.subr.mxu0 0.0
        %471 = vmatpush1.msra.mxu0 0.0
        %472 = vmatprep.subr.mxu0 0.0
        %473 = vmatpush1.msra.mxu0 0.0
        %474 = vmatprep.subr.mxu0 0.0
        %475 = vmatpush1.msra.mxu0 0.0
        %476 = vmatprep.subr.mxu0 0.0
        %477 = vmatpush1.msra.mxu0 0.0
        %478 = vmatprep.subr.mxu0 0.0
        %479 = vmatpush1.msra.mxu0 0.0
        %480 = vmatprep.subr.mxu0 0.0
        %481 = vmatpush1.msra.mxu0 0.0
        %482 = vmatprep.subr.mxu0 0.0
        %483 = vmatpush1.msra.mxu0 0.0
        %484 = vmatprep.subr.mxu0 0.0
        %485 = vmatpush1.msra.mxu0 0.0
        %v486 = vand.u32 %v228, 4294901760
        %v487 = vsub.f32 %v228, %v486
        %488 = vmatprep.subr.mxu0 %v487
        %v489 = vand.u32 %v227, 4294901760
        %v490 = vsub.f32 %v227, %v489
        %491 = vmatpush1.msra.mxu0 %v490
        %v492 = vand.u32 %v226, 4294901760
        %v493 = vsub.f32 %v226, %v492
        %494 = vmatprep.subr.mxu0 %v493
        %v495 = vand.u32 %v225, 4294901760
        %v496 = vsub.f32 %v225, %v495
        %497 = vmatpush1.msra.mxu0 %v496
        %v498 = vand.u32 %v224, 4294901760
        %v499 = vsub.f32 %v224, %v498
        %500 = vmatprep.subr.mxu0 %v499
        %v501 = vand.u32 %v223, 4294901760
        %v502 = vsub.f32 %v223, %v501
        %503 = vmatpush1.msra.mxu0 %v502
        %v504 = vand.u32 %v222, 4294901760
        %v505 = vsub.f32 %v222, %v504
        %506 = vmatprep.subr.mxu0 %v505
        %v507 = vand.u32 %v221, 4294901760
        %v508 = vsub.f32 %v221, %v507
        %509 = vmatpush1.msra.mxu0 %v508
        %510 = vmatprep.subr.mxu0 0.0
        %511 = vmatpush2.msra.mxu0 0.0
        %512 = vmatprep.subr.mxu0 0.0
        %513 = vmatpush2.msra.mxu0 0.0
        %514 = vmatprep.subr.mxu0 0.0
        %515 = vmatpush2.msra.mxu0 0.0
        %516 = vmatprep.subr.mxu0 0.0
        %517 = vmatpush2.msra.mxu0 0.0
        %518 = vmatprep.subr.mxu0 0.0
        %519 = vmatpush2.msra.mxu0 0.0
        %520 = vmatprep.subr.mxu0 0.0
        %521 = vmatpush2.msra.mxu0 0.0
        %522 = vmatprep.subr.mxu0 0.0
        %523 = vmatpush2.msra.mxu0 0.0
        %524 = vmatprep.subr.mxu0 0.0
        %525 = vmatpush2.msra.mxu0 0.0
        %526 = vmatprep.subr.mxu0 0.0
        %527 = vmatpush2.msra.mxu0 0.0
        %528 = vmatprep.subr.mxu0 0.0
        %529 = vmatpush2.msra.mxu0 0.0
        %530 = vmatprep.subr.mxu0 0.0
        %531 = vmatpush2.msra.mxu0 0.0
        %532 = vmatprep.subr.mxu0 0.0
        %533 = vmatpush2.msra.mxu0 0.0
        %534 = vmatprep.subr.mxu0 0.0
        %535 = vmatpush2.msra.mxu0 0.0
        %536 = vmatprep.subr.mxu0 0.0
        %537 = vmatpush2.msra.mxu0 0.0
        %538 = vmatprep.subr.mxu0 0.0
        %539 = vmatpush2.msra.mxu0 0.0
        %540 = vmatprep.subr.mxu0 0.0
        %541 = vmatpush2.msra.mxu0 0.0
        %542 = vmatprep.mubr.f32.mxu0 0.0
        %v543 = vand.u32 %v243, 4294901760
        %v544 = vsub.f32 %v243, %v543
        %545 = vmatmul.mubr.f32.gmra.mxu0 %v544
        %v546 = vpop.f32.mrf.mxu0
        %v547 = vadd.f32 %v451, %v546
        %v548 = vpop.f32.mrf.mxu0
        %v549 = vadd.f32 %v453, %v548
        %550 = vmatprep.mubr.f32.mxu0 0.0
        %v551 = vand.u32 %v246, 4294901760
        %v552 = vsub.f32 %v246, %v551
        %553 = vmatmul.mubr.f32.gmra.mxu0 %v552
        %v554 = vpop.f32.mrf.mxu0
        %v555 = vadd.f32 %v458, %v554
        %v556 = vpop.f32.mrf.mxu0
        %v557 = vadd.f32 %v460, %v556
        %558 = vdwg.mxu0
        %559 = vmatprep.subr.mxu0 0.0
        %560 = vmatpush1.msra.mxu0 0.0
        %561 = vmatprep.subr.mxu0 0.0
        %562 = vmatpush1.msra.mxu0 0.0
        %563 = vmatprep.subr.mxu0 0.0
        %564 = vmatpush1.msra.mxu0 0.0
        %565 = vmatprep.subr.mxu0 0.0
        %566 = vmatpush1.msra.mxu0 0.0
        %567 = vmatprep.subr.mxu0 0.0
        %568 = vmatpush1.msra.mxu0 0.0
        %569 = vmatprep.subr.mxu0 0.0
        %570 = vmatpush1.msra.mxu0 0.0
        %571 = vmatprep.subr.mxu0 0.0
        %572 = vmatpush1.msra.mxu0 0.0
        %573 = vmatprep.subr.mxu0 0.0
        %574 = vmatpush1.msra.mxu0 0.0
        %575 = vmatprep.subr.mxu0 0.0
        %576 = vmatpush1.msra.mxu0 0.0
        %577 = vmatprep.subr.mxu0 0.0
        %578 = vmatpush1.msra.mxu0 0.0
        %579 = vmatprep.subr.mxu0 0.0
        %580 = vmatpush1.msra.mxu0 0.0
        %581 = vmatprep.subr.mxu0 0.0
        %582 = vmatpush1.msra.mxu0 0.0
        %v583 = vand.u32 %v228, 4294901760
        %584 = vmatprep.subr.mxu0 %v583
        %v585 = vand.u32 %v227, 4294901760
        %586 = vmatpush1.msra.mxu0 %v585
        %v587 = vand.u32 %v226, 4294901760
        %588 = vmatprep.subr.mxu0 %v587
        %v589 = vand.u32 %v225, 4294901760
        %590 = vmatpush1.msra.mxu0 %v589
        %v591 = vand.u32 %v224, 4294901760
        %592 = vmatprep.subr.mxu0 %v591
        %v593 = vand.u32 %v223, 4294901760
        %594 = vmatpush1.msra.mxu0 %v593
        %v595 = vand.u32 %v222, 4294901760
        %596 = vmatprep.subr.mxu0 %v595
        %v597 = vand.u32 %v221, 4294901760
        %598 = vmatpush1.msra.mxu0 %v597
        %599 = vmatprep.subr.mxu0 0.0
        %600 = vmatpush2.msra.mxu0 0.0
        %601 = vmatprep.subr.mxu0 0.0
        %602 = vmatpush2.msra.mxu0 0.0
        %603 = vmatprep.subr.mxu0 0.0
        %604 = vmatpush2.msra.mxu0 0.0
        %605 = vmatprep.subr.mxu0 0.0
        %606 = vmatpush2.msra.mxu0 0.0
        %607 = vmatprep.subr.mxu0 0.0
        %608 = vmatpush2.msra.mxu0 0.0
        %609 = vmatprep.subr.mxu0 0.0
        %610 = vmatpush2.msra.mxu0 0.0
        %611 = vmatprep.subr.mxu0 0.0
        %612 = vmatpush2.msra.mxu0 0.0
        %613 = vmatprep.subr.mxu0 0.0
        %614 = vmatpush2.msra.mxu0 0.0
        %615 = vmatprep.subr.mxu0 0.0
        %616 = vmatpush2.msra.mxu0 0.0
        %617 = vmatprep.subr.mxu0 0.0
        %618 = vmatpush2.msra.mxu0 0.0
        %619 = vmatprep.subr.mxu0 0.0
        %620 = vmatpush2.msra.mxu0 0.0
        %621 = vmatprep.subr.mxu0 0.0
        %622 = vmatpush2.msra.mxu0 0.0
        %623 = vmatprep.subr.mxu0 0.0
        %624 = vmatpush2.msra.mxu0 0.0
        %625 = vmatprep.subr.mxu0 0.0
        %626 = vmatpush2.msra.mxu0 0.0
        %627 = vmatprep.subr.mxu0 0.0
        %628 = vmatpush2.msra.mxu0 0.0
        %629 = vmatprep.subr.mxu0 0.0
        %630 = vmatpush2.msra.mxu0 0.0
        %631 = vmatprep.mubr.f32.mxu0 0.0
        %v632 = vand.u32 %v243, 4294901760
        %v633 = vsub.f32 %v243, %v632
        %v634 = vand.u32 %v633, 4294901760
        %635 = vmatmul.mubr.f32.gmra.mxu0 %v634
        %v636 = vpop.f32.mrf.mxu0
        %v637 = vadd.f32 %v547, %v636
        %v638 = vpop.f32.mrf.mxu0
        %v639 = vadd.f32 %v549, %v638
        %640 = vmatprep.mubr.f32.mxu0 0.0
        %v641 = vand.u32 %v246, 4294901760
        %v642 = vsub.f32 %v246, %v641
        %v643 = vand.u32 %v642, 4294901760
        %644 = vmatmul.mubr.f32.gmra.mxu0 %v643
        %v645 = vpop.f32.mrf.mxu0
        %v646 = vadd.f32 %v555, %v645
        %v647 = vpop.f32.mrf.mxu0
        %v648 = vadd.f32 %v557, %v647
        %649 = vdwg.mxu0
        %650 = vmatprep.subr.mxu0 0.0
        %651 = vmatpush1.msra.mxu0 0.0
        %652 = vmatprep.subr.mxu0 0.0
        %653 = vmatpush1.msra.mxu0 0.0
        %654 = vmatprep.subr.mxu0 0.0
        %655 = vmatpush1.msra.mxu0 0.0
        %656 = vmatprep.subr.mxu0 0.0
        %657 = vmatpush1.msra.mxu0 0.0
        %658 = vmatprep.subr.mxu0 0.0
        %659 = vmatpush1.msra.mxu0 0.0
        %660 = vmatprep.subr.mxu0 0.0
        %661 = vmatpush1.msra.mxu0 0.0
        %662 = vmatprep.subr.mxu0 0.0
        %663 = vmatpush1.msra.mxu0 0.0
        %664 = vmatprep.subr.mxu0 0.0
        %665 = vmatpush1.msra.mxu0 0.0
        %666 = vmatprep.subr.mxu0 0.0
        %667 = vmatpush1.msra.mxu0 0.0
        %668 = vmatprep.subr.mxu0 0.0
        %669 = vmatpush1.msra.mxu0 0.0
        %670 = vmatprep.subr.mxu0 0.0
        %671 = vmatpush1.msra.mxu0 0.0
        %672 = vmatprep.subr.mxu0 0.0
        %673 = vmatpush1.msra.mxu0 0.0
        %v674 = vand.u32 %v228, 4294901760
        %v675 = vsub.f32 %v228, %v674
        %v676 = vand.u32 %v675, 4294901760
        %677 = vmatprep.subr.mxu0 %v676
        %v678 = vand.u32 %v227, 4294901760
        %v679 = vsub.f32 %v227, %v678
        %v680 = vand.u32 %v679, 4294901760
        %681 = vmatpush1.msra.mxu0 %v680
        %v682 = vand.u32 %v226, 4294901760
        %v683 = vsub.f32 %v226, %v682
        %v684 = vand.u32 %v683, 4294901760
        %685 = vmatprep.subr.mxu0 %v684
        %v686 = vand.u32 %v225, 4294901760
        %v687 = vsub.f32 %v225, %v686
        %v688 = vand.u32 %v687, 4294901760
        %689 = vmatpush1.msra.mxu0 %v688
        %v690 = vand.u32 %v224, 4294901760
        %v691 = vsub.f32 %v224, %v690
        %v692 = vand.u32 %v691, 4294901760
        %693 = vmatprep.subr.mxu0 %v692
        %v694 = vand.u32 %v223, 4294901760
        %v695 = vsub.f32 %v223, %v694
        %v696 = vand.u32 %v695, 4294901760
        %697 = vmatpush1.msra.mxu0 %v696
        %v698 = vand.u32 %v222, 4294901760
        %v699 = vsub.f32 %v222, %v698
        %v700 = vand.u32 %v699, 4294901760
        %701 = vmatprep.subr.mxu0 %v700
        %v702 = vand.u32 %v221, 4294901760
        %v703 = vsub.f32 %v221, %v702
        %v704 = vand.u32 %v703, 4294901760
        %705 = vmatpush1.msra.mxu0 %v704
        %706 = vmatprep.subr.mxu0 0.0
        %707 = vmatpush2.msra.mxu0 0.0
        %708 = vmatprep.subr.mxu0 0.0
        %709 = vmatpush2.msra.mxu0 0.0
        %710 = vmatprep.subr.mxu0 0.0
        %711 = vmatpush2.msra.mxu0 0.0
        %712 = vmatprep.subr.mxu0 0.0
        %713 = vmatpush2.msra.mxu0 0.0
        %714 = vmatprep.subr.mxu0 0.0
        %715 = vmatpush2.msra.mxu0 0.0
        %716 = vmatprep.subr.mxu0 0.0
        %717 = vmatpush2.msra.mxu0 0.0
        %718 = vmatprep.subr.mxu0 0.0
        %719 = vmatpush2.msra.mxu0 0.0
        %720 = vmatprep.subr.mxu0 0.0
        %721 = vmatpush2.msra.mxu0 0.0
        %722 = vmatprep.subr.mxu0 0.0
        %723 = vmatpush2.msra.mxu0 0.0
        %724 = vmatprep.subr.mxu0 0.0
        %725 = vmatpush2.msra.mxu0 0.0
        %726 = vmatprep.subr.mxu0 0.0
        %727 = vmatpush2.msra.mxu0 0.0
        %728 = vmatprep.subr.mxu0 0.0
        %729 = vmatpush2.msra.mxu0 0.0
        %730 = vmatprep.subr.mxu0 0.0
        %731 = vmatpush2.msra.mxu0 0.0
        %732 = vmatprep.subr.mxu0 0.0
        %733 = vmatpush2.msra.mxu0 0.0
        %734 = vmatprep.subr.mxu0 0.0
        %735 = vmatpush2.msra.mxu0 0.0
        %736 = vmatprep.subr.mxu0 0.0
        %737 = vmatpush2.msra.mxu0 0.0
        %738 = vmatprep.mubr.f32.mxu0 0.0
        %v739 = vand.u32 %v243, 4294901760
        %740 = vmatmul.mubr.f32.gmra.mxu0 %v739
        %v741 = vpop.f32.mrf.mxu0
        %v742 = vadd.f32 %v637, %v741
        %v743 = vpop.f32.mrf.mxu0
        %v744 = vadd.f32 %v639, %v743
        %745 = vmatprep.mubr.f32.mxu0 0.0
        %v746 = vand.u32 %v246, 4294901760
        %747 = vmatmul.mubr.f32.gmra.mxu0 %v746
        %v748 = vpop.f32.mrf.mxu0
        %v749 = vadd.f32 %v646, %v748
        %v750 = vpop.f32.mrf.mxu0
        %v751 = vadd.f32 %v648, %v750
        %752 = vdwg.mxu0
        %753 = vmatprep.subr.mxu0 0.0
        %754 = vmatpush1.msra.mxu0 0.0
        %755 = vmatprep.subr.mxu0 0.0
        %756 = vmatpush1.msra.mxu0 0.0
        %757 = vmatprep.subr.mxu0 0.0
        %758 = vmatpush1.msra.mxu0 0.0
        %759 = vmatprep.subr.mxu0 0.0
        %760 = vmatpush1.msra.mxu0 0.0
        %761 = vmatprep.subr.mxu0 0.0
        %762 = vmatpush1.msra.mxu0 0.0
        %763 = vmatprep.subr.mxu0 0.0
        %764 = vmatpush1.msra.mxu0 0.0
        %765 = vmatprep.subr.mxu0 0.0
        %766 = vmatpush1.msra.mxu0 0.0
        %767 = vmatprep.subr.mxu0 0.0
        %768 = vmatpush1.msra.mxu0 0.0
        %769 = vmatprep.subr.mxu0 0.0
        %770 = vmatpush1.msra.mxu0 0.0
        %771 = vmatprep.subr.mxu0 0.0
        %772 = vmatpush1.msra.mxu0 0.0
        %773 = vmatprep.subr.mxu0 0.0
        %774 = vmatpush1.msra.mxu0 0.0
        %775 = vmatprep.subr.mxu0 0.0
        %776 = vmatpush1.msra.mxu0 0.0
        %v777 = vand.u32 %v228, 4294901760
        %778 = vmatprep.subr.mxu0 %v777
        %v779 = vand.u32 %v227, 4294901760
        %780 = vmatpush1.msra.mxu0 %v779
        %v781 = vand.u32 %v226, 4294901760
        %782 = vmatprep.subr.mxu0 %v781
        %v783 = vand.u32 %v225, 4294901760
        %784 = vmatpush1.msra.mxu0 %v783
        %v785 = vand.u32 %v224, 4294901760
        %786 = vmatprep.subr.mxu0 %v785
        %v787 = vand.u32 %v223, 4294901760
        %788 = vmatpush1.msra.mxu0 %v787
        %v789 = vand.u32 %v222, 4294901760
        %790 = vmatprep.subr.mxu0 %v789
        %v791 = vand.u32 %v221, 4294901760
        %792 = vmatpush1.msra.mxu0 %v791
        %793 = vmatprep.subr.mxu0 0.0
        %794 = vmatpush2.msra.mxu0 0.0
        %795 = vmatprep.subr.mxu0 0.0
        %796 = vmatpush2.msra.mxu0 0.0
        %797 = vmatprep.subr.mxu0 0.0
        %798 = vmatpush2.msra.mxu0 0.0
        %799 = vmatprep.subr.mxu0 0.0
        %800 = vmatpush2.msra.mxu0 0.0
        %801 = vmatprep.subr.mxu0 0.0
        %802 = vmatpush2.msra.mxu0 0.0
        %803 = vmatprep.subr.mxu0 0.0
        %804 = vmatpush2.msra.mxu0 0.0
        %805 = vmatprep.subr.mxu0 0.0
        %806 = vmatpush2.msra.mxu0 0.0
        %807 = vmatprep.subr.mxu0 0.0
        %808 = vmatpush2.msra.mxu0 0.0
        %809 = vmatprep.subr.mxu0 0.0
        %810 = vmatpush2.msra.mxu0 0.0
        %811 = vmatprep.subr.mxu0 0.0
        %812 = vmatpush2.msra.mxu0 0.0
        %813 = vmatprep.subr.mxu0 0.0
        %814 = vmatpush2.msra.mxu0 0.0
        %815 = vmatprep.subr.mxu0 0.0
        %816 = vmatpush2.msra.mxu0 0.0
        %817 = vmatprep.subr.mxu0 0.0
        %818 = vmatpush2.msra.mxu0 0.0
        %819 = vmatprep.subr.mxu0 0.0
        %820 = vmatpush2.msra.mxu0 0.0
        %821 = vmatprep.subr.mxu0 0.0
        %822 = vmatpush2.msra.mxu0 0.0
        %823 = vmatprep.subr.mxu0 0.0
        %824 = vmatpush2.msra.mxu0 0.0
        %825 = vmatprep.mubr.f32.mxu0 0.0
        %v826 = vand.u32 %v243, 4294901760
        %827 = vmatmul.mubr.f32.gmra.mxu0 %v826
        %v828 = vpop.f32.mrf.mxu0
        %v829 = vadd.f32 %v742, %v828
        %v830 = vpop.f32.mrf.mxu0
        %v831 = vadd.f32 %v744, %v830
        %832 = vmatprep.mubr.f32.mxu0 0.0
        %v833 = vand.u32 %v246, 4294901760
        %834 = vmatmul.mubr.f32.gmra.mxu0 %v833
        %v835 = vpop.f32.mrf.mxu0
        %v836 = vadd.f32 %v749, %v835
        %v837 = vpop.f32.mrf.mxu0
        %v838 = vadd.f32 %v751, %v837
        %839 = vdwg.mxu0
        %840 = vst [vmem:[%s217] sm:$0xff] %v829
        %841 = vst [vmem:[%s217 + $0x8] sm:$0xff] %v831
        %842 = vst [vmem:[%s217 + $0x10] sm:$0xf] %v836
        %843 = vst [vmem:[%s217 + $0x18] sm:$0xf] %v838
        %s844 = smul.u32 2, %s22
        %p845 = scmp.lt.s32.totalorder %s21, 1
        %s846 = scalar_select %p845, %s21, 1
        %p847 = scmp.lt.s32.totalorder %s844, 1
        %s848 = scalar_select %p847, %s844, 1
        %s849 = smul.addr %s846, 4
        %s850 = sadd.s32 %s848, %s849
        %s851 = smul.addr %s850, 8
        %s852 = scalar_lea.vmem %s3, %s851
        // Predicated region
        $region37: #{tpu_custom_call.1} parent=31 // pred_check
          %p853 = pneg %p119
        $region38: #{tpu_custom_call.1} parent=31 // pred_check_branch
          %855 = sbr.rel (%p853) target = $region40
        $region39: #{tpu_custom_call.1} parent=31 // pred_region
          %s856 = smul.u32 2, %s22
        $region40: #{tpu_custom_call.1} parent=31 // pred_fallthru
          _
      $region32: #{tpu_custom_call.1} parent=5 // pred_fallthru
        _
      %p857 = scmp.le.s32.totalorder 2, %s12
      // Predicated region
      $region41: #{tpu_custom_call.1} parent=5 // pred_check
        %p858 = pneg %p857
      $region42: #{tpu_custom_call.1} parent=5 // pred_check_branch
        %860 = sbr.rel (%p858) target = $region44
      $region43: #{tpu_custom_call.1} parent=5 // pred_region
        %s861 = ssub.s32 %s12, 2
        // Predicated region
        $region45: #{tpu_custom_call.1} parent=43 // pred_check
          %p862 = pneg %p125
        $region46: #{tpu_custom_call.1} parent=43 // pred_check_branch
          %864 = sbr.rel (%p862) target = $region48
        $region47: #{tpu_custom_call.1} parent=43 // pred_region
          %s865 = smul.u32 2, %s24
          %p866 = scmp.lt.s32.totalorder %s23, 1
          %s867 = scalar_select %p866, %s23, 1
          %p868 = scmp.lt.s32.totalorder %s865, 1
          %s869 = scalar_select %p868, %s865, 1
          %s870 = smul.addr %s867, 4
          %s871 = sadd.s32 %s869, %s870
          %s872 = smul.addr %s871, 8
          %s873 = scalar_lea.vmem %s3, %s872
        $region48: #{tpu_custom_call.1} parent=43 // pred_fallthru
          _
      $region44: #{tpu_custom_call.1} parent=5 // pred_fallthru
        _
    $region6: #{tpu_custom_call.1} parent=1 // loop_footer
      %s16 = sadd.s32 1, %s12
    $region7: #{tpu_custom_call.1} parent=1 // loop_footer_branch
      %11 = sbr.rel target = $region3
    $region8: #{tpu_custom_call.1} parent=1 // loop_exit
      _
    %874 = vsyncpa [#allocation3], 1
    %s875 = scalar_lea.sflag [#allocation3], 1
    %876 = vsyncpa %s875, 1

</llo_original>
